<compile_context>
chip_gen: v6e
topology: v6e:2x2x1
jax: 0.10.0
libtpu: 0.0.40
codegen_flags: <defaults>
</compile_context>

<pallas_src>
import functools

import jax
import jax.numpy as jnp
from jax.experimental import pallas as pl
from jax.experimental.pallas import tpu as pltpu


_MAX_ITEM_TILE = 8192        # max lanes per item tile (multiple of 128)
_NEG_BIAS = -1e30            # additive pre-softmax mask for padded item columns


def _round_up(x, m):
    return ((x + m - 1) // m) * m


@functools.lru_cache(maxsize=1)
def _device_kind():
    try:
        return jax.devices()[0].device_kind.lower()
    except Exception:  # pragma: no cover
        return ""


@functools.lru_cache(maxsize=1)
def _vmem_capacity_bytes():
    try:
        return int(pltpu.get_tpu_info().vmem_capacity_bytes)
    except Exception:  # pragma: no cover
        return 64 * 1024 * 1024          # conservative: v7x per-TC VMEM


@functools.lru_cache(maxsize=1)
def _use_bf16_exp():
    # bf16 exp roughly doubles EUP throughput.  Only worth it where HBM is fast
    # enough that the two f32 exp passes would otherwise saturate the single
    # EUP slot (v7x).  v5e has no bf16 EUP at all -> keep f32 there (and v6e).
    return "v7" in _device_kind()


@functools.lru_cache(maxsize=1)
def _num_tensorcores():
    return 2 if "v7" in _device_kind() else 1


def _vmem_bytes(batch_tile, item_tile, E):
    """Rough double-buffered VMEM footprint of one kernel step."""
    embT = E * item_tile * 2                       # bf16 item tile
    out = batch_tile * item_tile * 4               # f32 output tile
    proj = batch_tile * E * 2                      # bf16 projection tile
    vecs = 2 * item_tile * 4                       # pad bias + demand weight
    scratch = 2 * _round_up(batch_tile, 8) * 128 * 4   # m/l scratch (lane-padded)
    return 2 * (embT + out + proj + vecs) + scratch


# ----------------------------------------------------------------------------
# Precomputed (call-invariant) item table cache -- built OUTSIDE the jitted
# forward, once per weight update, so the transpose/cast/pad of the whole
# catalog is not re-executed every step.
# ----------------------------------------------------------------------------
def make_item_table_cache(emb_i, *, max_item_tile=_MAX_ITEM_TILE):
    """Returns the bf16-transposed, lane-padded item table + padding bias row.

    Must be rebuilt whenever `emb_i` changes (i.e. after each optimizer step
    during training; once, up front, for inference).
    """
    n_items, _ = emb_i.shape
    if n_items <= max_item_tile:
        n_items_pad = _round_up(n_items, 128)
    else:
        n_items_pad = _round_up(n_items, max_item_tile)
    embT = jnp.pad(emb_i.astype(jnp.bfloat16).T,
                   ((0, 0), (0, n_items_pad - n_items)))        # (E, n_items_pad)
    valid = jnp.arange(n_items_pad) < n_items
    pad_bias = jnp.where(valid, 0.0, _NEG_BIAS).astype(jnp.float32)[None, :]
    return {"embT": embT, "pad_bias": pad_bias}


# ----------------------------------------------------------------------------
# Pallas kernels
# ----------------------------------------------------------------------------
def _pvsd_single_pass_kernel(proj_ref,   # (Bt, E)   bf16  PVSD session projection
                             embT_ref,   # (E, IT)   bf16  full item table (IT == n_items_pad)
                             bias_ref,   # (1, IT)   f32   0 / -1e30 padding mask
                             dsum_ref,   # (1, IT)   f32   sum_d demand_score_candidate
                             pv_ref,     # (Bt, IT)  f32   output
                             *, has_pad):
    """Fast path (n_jt == 1): one MXU matmul + one in-tile softmax."""
    scores = jnp.dot(proj_ref[...], embT_ref[...],
                     preferred_element_type=jnp.float32)        # (Bt, IT) f32
    if has_pad:
        scores = scores + bias_ref[...]
    m = jnp.max(scores, axis=-1, keepdims=True)
    e = jnp.exp(scores - m)
    l = jnp.sum(e, axis=-1, keepdims=True)
    pv_ref[...] = e * pl.reciprocal(l, approx=True) * dsum_ref[...]


def _pvsd_two_phase_kernel(proj_ref,     # (Bt, E)   bf16
                           embT_ref,     # (E, IT)   bf16  item tile j
                           bias_ref,     # (1, IT)   f32
                           dsum_ref,     # (1, IT)   f32
                           pv_ref,       # (Bt, IT)  f32   output tile
                           m_sc,         # (Bt, 1)   f32   running max
                           l_sc,         # (Bt, 1)   f32   running sum-exp
                           *, has_pad, bf16_exp):
    """Two-phase exact online softmax over item tiles for one batch tile.

    grid = (batch_tile i [parallel], phase p [arbitrary], item tile j [arbitrary]).
    phase 0: accumulate per-row running max / sum-exp into VMEM scratch.
    phase 1: re-score each tile and write the normalized, demand-weighted P_v.

    Output writeback note: the out_spec maps every phase-0 step to block (i, 0)
    -- the block phase-1/j==0 overwrites next -- so no stale data ever reaches
    HBM (Pallas only writes an output block back when its block index changes).
    Because the batch axis is the only 'parallel' axis and it is outermost,
    each core owns all (p, j) steps of its batch tiles, so this also holds
    under megacore sharding.
    """
    p = pl.program_id(1)
    j = pl.program_id(2)

    @pl.when(jnp.logical_and(p == 0, j == 0))
    def _():
        m_sc[...] = jnp.full(m_sc.shape, -jnp.inf, dtype=m_sc.dtype)
        l_sc[...] = jnp.zeros(l_sc.shape, dtype=l_sc.dtype)

    scores = jnp.dot(proj_ref[...], embT_ref[...],
                     preferred_element_type=jnp.float32)        # (Bt, IT) f32
    if has_pad:
        scores = scores + bias_ref[...]

    @pl.when(p == 0)
    def _():
        m_new = jnp.maximum(m_sc[...], jnp.max(scores, axis=-1, keepdims=True))
        x = scores - m_new
        if bf16_exp:   # v7x only: halve EUP cost of the sum-exp pass
            e = jnp.exp(x.astype(jnp.bfloat16)).astype(jnp.float32)
        else:
            e = jnp.exp(x)
        l_sc[...] = (l_sc[...] * jnp.exp(m_sc[...] - m_new)
                     + jnp.sum(e, axis=-1, keepdims=True))
        m_sc[...] = m_new

    @pl.when(p == 1)
    def _():
        inv_l = pl.reciprocal(l_sc[...], approx=True)            # EUP vrcp
        pv_ref[...] = jnp.exp(scores - m_sc[...]) * inv_l * dsum_ref[...]


def _pvsd_scores(proj, embT, pad_bias, dsum, *, batch_tile, item_tile,
                 has_pad, vmem_limit):
    """Returns padded P_v of shape (B_pad, n_items_pad), f32."""
    B_pad, E = proj.shape
    n_items_pad = embT.shape[1]
    n_bt = B_pad // batch_tile
    n_jt = n_items_pad // item_tile
    out_shape = jax.ShapeDtypeStruct((B_pad, n_items_pad), jnp.float32)

    if n_jt == 1:
        # Single-pass fast path: whole catalog in one resident item tile.
        kernel = functools.partial(_pvsd_single_pass_kernel, has_pad=has_pad)
        return pl.pallas_call(
            kernel,
            out_shape=out_shape,
            grid_spec=pltpu.PrefetchScalarGridSpec(
                num_scalar_prefetch=0,
                grid=(n_bt,),
                in_specs=[
                    pl.BlockSpec((batch_tile, E), lambda i: (i, 0)),
                    pl.BlockSpec((E, n_items_pad), lambda i: (0, 0)),
                    pl.BlockSpec((1, n_items_pad), lambda i: (0, 0)),
                    pl.BlockSpec((1, n_items_pad), lambda i: (0, 0)),
                ],
                out_specs=pl.BlockSpec((batch_tile, n_items_pad),
                                       lambda i: (i, 0)),
            ),
            compiler_params=pltpu.CompilerParams(
                dimension_semantics=("parallel",),
                vmem_limit_bytes=vmem_limit),
        )(proj, embT, pad_bias, dsum)

    # Multi-tile two-phase online softmax.
    # TODO(synk): for very large E*B a further win is a (phase, item, batch)
    #             grid with the whole proj resident in VMEM, so each embT tile
    #             is DMA'd twice total instead of twice per batch tile.
    kernel = functools.partial(_pvsd_two_phase_kernel, has_pad=has_pad,
                               bf16_exp=_use_bf16_exp())
    return pl.pallas_call(
        kernel,
        out_shape=out_shape,
        grid_spec=pltpu.PrefetchScalarGridSpec(
            num_scalar_prefetch=0,
            grid=(n_bt, 2, n_jt),              # (batch tile, phase, item tile)
            in_specs=[
                pl.BlockSpec((batch_tile, E), lambda i, p, j: (i, 0)),
                pl.BlockSpec((E, item_tile), lambda i, p, j: (0, j)),
                pl.BlockSpec((1, item_tile), lambda i, p, j: (0, j)),
                pl.BlockSpec((1, item_tile), lambda i, p, j: (0, j)),
            ],
            # phase 0 writes nothing; it maps to the block phase-1/j==0 writes
            # next, so writebacks only ever carry fresh phase-1 data.
            out_specs=pl.BlockSpec((batch_tile, item_tile),
                                   lambda i, p, j: (i, p * j)),
            scratch_shapes=[pltpu.VMEM((batch_tile, 1), jnp.float32),   # m
                            pltpu.VMEM((batch_tile, 1), jnp.float32)],  # l
        ),
        compiler_params=pltpu.CompilerParams(
            dimension_semantics=("parallel", "arbitrary", "arbitrary"),
            vmem_limit_bytes=vmem_limit),
    )(proj, embT, pad_bias, dsum)


# ----------------------------------------------------------------------------
# Full forward pass (glue in plain JAX, hot path in the Pallas kernel)
# ----------------------------------------------------------------------------
@functools.partial(jax.jit, static_argnames=("item_tile_cap",))
def demand_aware_rs_forward(params, item_cache, nodes, categories, adj,
                            nodes_categories, session_last_item_index,
                            candidate_category, mask_node, *,
                            item_tile_cap=None):
    del adj, nodes_categories  # unused because gnn_mask=True (no GNN layers)

    emb_i = params["emb_i"]          # (n_items, E), row 0 = padding (zeros)
    emb_c = params["emb_c"]          # (n_categories, Ec), row 0 = padding
    w_d = params["w_d"]              # (Ec, n_demand)
    wp_g = params["wp_g"]            # (E, E)
    wp_l = params["wp_l"]            # (E, E)
    bp = params["bp"]                # (1, E)
    embT = item_cache["embT"]        # (E, n_items_pad) bf16, precomputed
    pad_bias = item_cache["pad_bias"]  # (1, n_items_pad) f32

    B, N = nodes.shape
    n_items, E = emb_i.shape
    n_items_pad = embT.shape[1]

    # Item-embedding lookup.  With gnn_mask=True the module's
    # gnn_node_representation is this tensor broadcast along the demand axis,
    # so the (B, D, N, E) copy is never materialized or DMA'd.
    session_emb = jnp.take(emb_i, nodes, axis=0)                    # (B, N, E)

    # DemandExtraction: demand scores for session categories and candidates.
    cat_emb = jnp.take(emb_c, categories, axis=0)                   # (B, S, Ec)
    demand_score = jax.nn.softmax(cat_emb @ w_d, axis=-1)           # (B, S, D)
    del demand_score  # only consumed by the (undefined) infomax loss
    cand_emb = jnp.take(emb_c, candidate_category, axis=0)          # (n_items, Ec)
    demand_score_candidate = jax.nn.softmax(cand_emb @ w_d, axis=-1)
    # gnn_mask=True => P(v|s,d) is identical for every d, so the demand mixing
    # collapses exactly to a single per-item weight sum_d dsc[v, d] (== 1 with
    # this stand-in extractor; kept for fidelity with the PyTorch reduction).
    dsc_sum = jnp.sum(demand_score_candidate, axis=-1)              # (n_items,)

    # Graph aggregation ('mean') + last-item gather + PVSD projection, hoisted
    # out of the kernel (tiny (B, E) matmuls; XLA fuses them fine).
    mask_f = mask_node.astype(jnp.float32)
    inv_msum = 1.0 / jnp.maximum(jnp.sum(mask_f, axis=-1, keepdims=True), 1.0)
    graph_rep = jnp.einsum("bn,bne->be", mask_f, session_emb) * inv_msum
    last_item = session_emb[jnp.arange(B), session_last_item_index]  # (B, E)
    proj = graph_rep @ wp_g + last_item @ wp_l + bp                  # (B, E) f32
    proj_bf = proj.astype(jnp.bfloat16)          # bf16 MXU operand; acc stays f32

    # ---------------- tiling (all static at trace time) ----------------
    vmem_cap = _vmem_capacity_bytes()
    budget = min(40 << 20, int(0.55 * vmem_cap))

    if B >= 256 and "v5" not in _device_kind():
        batch_tile = 256            # fills the 256-wide MXU M dim (v6e/v7x)
    else:
        batch_tile = min(128, _round_up(B, 16))

    cap = item_tile_cap if item_tile_cap is not None else _MAX_ITEM_TILE
    if n_items_pad <= cap:
        tile_candidates = [n_items_pad]
    else:
        tile_candidates = [t for t in (8192, 4096, 2048, 1024, 512, 256, 128)
                           if t <= cap and n_items_pad % t == 0]
        if not tile_candidates:
            tile_candidates = [n_items_pad]
    item_tile = tile_candidates[0]

    while _vmem_bytes(batch_tile, item_tile, E) > budget:
        smaller = [t for t in tile_candidates if t < item_tile]
        if smaller:
            item_tile = smaller[0]
        elif batch_tile > 8:
            batch_tile = max(8, (batch_tile // 2) // 8 * 8)
        else:
            break

    B_pad = _round_up(B, batch_tile)
    # v7x: 2 TensorCores -- make sure the (parallel) batch axis has >= 2 tiles
    # so small-batch serving does not leave a core idle.
    if (_num_tensorcores() > 1 and B_pad // batch_tile < 2
            and batch_tile >= 16 and B > batch_tile // 2):
        batch_tile //= 2
        B_pad = _round_up(B, batch_tile)

    vmem_req = int(min(max(_vmem_bytes(batch_tile, item_tile, E) + (8 << 20),
                           16 << 20),
                       int(0.85 * vmem_cap)))

    proj_p = jnp.pad(proj_bf, ((0, B_pad - B), (0, 0)))
    dsum_p = jnp.pad(dsc_sum, (0, n_items_pad - n_items)).reshape(1, n_items_pad)

    pv = _pvsd_scores(proj_p, embT, pad_bias, dsum_p.astype(jnp.float32),
                      batch_tile=batch_tile, item_tile=item_tile,
                      has_pad=(n_items_pad != n_items), vmem_limit=vmem_req)
    P_v = pv[:B, :n_items]

    # TODO(synk): GNN.get_graph_infomax_loss source not provided; returning 0.
    infomax_loss = jnp.float32(0.0)

    # The module's gnn_node_representation (B, D, N, E) is a pure broadcast of
    # session_emb along D (gnn_mask=True); return the compact (B, N, E) tensor
    # so callers can broadcast lazily instead of paying a D-times HBM write.
    return P_v, infomax_loss, session_emb


# ----------------------------------------------------------------------------
# Pure-JAX f32 reference of the same forward (for correctness checking)
# ----------------------------------------------------------------------------
def _reference_forward(params, nodes, session_last_item_index,
                       candidate_category, mask_node):
    emb_i = params["emb_i"]
    sess = jnp.take(emb_i, nodes, axis=0)                           # (B, N, E)
    B = sess.shape[0]
    mask = mask_node.astype(jnp.float32)
    graph = (jnp.sum(mask[:, :, None] * sess, axis=1)
             / jnp.maximum(jnp.sum(mask, axis=-1, keepdims=True), 1.0))
    last = sess[jnp.arange(B), session_last_item_index]             # (B, E)
    proj = graph @ params["wp_g"] + last @ params["wp_l"] + params["bp"]
    p = jax.nn.softmax(proj @ emb_i.T, axis=-1)      # identical for every demand
    dsc = jax.nn.softmax(
        jnp.take(params["emb_c"], candidate_category, axis=0) @ params["w_d"],
        axis=-1)
    return p * jnp.sum(dsc, axis=-1)[None, :]


# ----------------------------------------------------------------------------
# Deterministic parameter init + tests
# ----------------------------------------------------------------------------
def init_params(key, n_items, n_categories, emb_i_dim, emb_c_dim, n_demand):
    ks = jax.random.split(key, 6)
    emb_i = 0.1 * jax.random.normal(ks[0], (n_items, emb_i_dim), jnp.float32)
    emb_i = emb_i.at[0].set(0.0)                                   # padding_idx=0
    emb_c = 0.1 * jax.random.normal(ks[1], (n_categories, emb_c_dim), jnp.float32)
    emb_c = emb_c.at[0].set(0.0)                                   # padding_idx=0
    return {
        "emb_i": emb_i,
        "emb_c": emb_c,
        "w_d": 0.1 * jax.random.normal(ks[2], (emb_c_dim, n_demand), jnp.float32),
        "wp_g": 0.1 * jax.random.normal(ks[3], (emb_i_dim, emb_i_dim), jnp.float32),
        "wp_l": 0.1 * jax.random.normal(ks[4], (emb_i_dim, emb_i_dim), jnp.float32),
        "bp": 0.01 * jax.random.normal(ks[5], (1, emb_i_dim), jnp.float32),
    }


def _run_case(name, *, B, N, S, E, Ec, D, n_items, n_cats, item_tile_cap, seed):
    key = jax.random.PRNGKey(seed)
    k_nodes, k_cats, k_adj, k_nc, k_cc, k_last = jax.random.split(key, 6)

    nodes = jax.random.randint(k_nodes, (B, N), 1, n_items, dtype=jnp.int32)
    categories = jax.random.randint(k_cats, (B, S), 1, n_cats, dtype=jnp.int32)
    adj = jax.random.uniform(k_adj, (B, N, N), jnp.float32)
    nodes_categories = jax.random.uniform(k_nc, (B, N, S), jnp.float32)
    session_last_item_index = jax.random.randint(k_last, (B,), 0, N, dtype=jnp.int32)
    candidate_category = jax.random.randint(k_cc, (n_items,), 1, n_cats,
                                            dtype=jnp.int32)
    mask_node = jnp.ones((B, N), dtype=jnp.int32)   # all nodes clicked

    params = init_params(jax.random.PRNGKey(seed + 42), n_items, n_cats, E, Ec, D)
    # Built once, outside the jitted step (key perf fix vs. previous revision).
    item_cache = make_item_table_cache(params["emb_i"])

    P_v, infomax_loss, sess_rep = demand_aware_rs_forward(
        params, item_cache, nodes, categories, adj, nodes_categories,
        session_last_item_index, candidate_category, mask_node,
        item_tile_cap=item_tile_cap)

    P_v = jax.block_until_ready(P_v)
    jax.block_until_ready(infomax_loss)
    jax.block_until_ready(sess_rep)

    assert P_v.shape == (B, n_items), name
    assert sess_rep.shape == (B, N, E), name          # broadcast along D -> (B,D,N,E)
    assert bool(jnp.all(jnp.isfinite(P_v))), name
    # Rows are convex mixtures of per-demand softmaxes -> sum to ~1
    # (approx reciprocal + bf16 operands => loose-ish tolerance).
    assert bool(jnp.allclose(jnp.sum(P_v, axis=-1), 1.0, atol=2e-2)), name

    P_ref = _reference_forward(params, nodes, session_last_item_index,
                               candidate_category, mask_node)
    assert bool(jnp.allclose(P_v, P_ref, rtol=5e-2, atol=1e-4)), name


if __name__ == "__main__":
    # Case 1: whole catalog fits one item tile -> single-pass fast path.
    _run_case("single_tile", B=2, N=8, S=16, E=32, Ec=16, D=4,
              n_items=256, n_cats=16, item_tile_cap=None, seed=0)
    # Case 2: caps the item tile at 128 lanes to force the multi-tile two-phase
    # online-softmax path, including the padded-column mask (500 -> 512 items).
    _run_case("multi_tile", B=2, N=8, S=16, E=32, Ec=16, D=4,
              n_items=500, n_cats=16, item_tile_cap=128, seed=1)
    print("KERNEL_OK")
</pallas_src>

<mosaic_0001>
module attributes {stable_mosaic.version = 11 : i64} {
  func.func @_pvsd_single_pass_kernel(%arg0: i32, %arg1: memref<16x32xbf16, #tpu.memory_space<vmem>>, %arg2: memref<32x256xbf16, #tpu.memory_space<vmem>>, %arg3: memref<1x256xf32, #tpu.memory_space<vmem>>, %arg4: memref<1x256xf32, #tpu.memory_space<vmem>>, %arg5: memref<16x256xf32, #tpu.memory_space<vmem>>) attributes {dimension_semantics = [#tpu.dimension_semantics<parallel>], iteration_bounds = array<i64: 1>, scalar_prefetch = 0 : i64, scratch_operands = 0 : i64, tpu.core_type = #tpu.core_type<tc>, window_params = [{transform_indices = @transform_0, window_bounds = array<i64: 16, 32>}, {pipeline_mode = #tpu.pipeline_mode<synchronous>, transform_indices = @transform_1, window_bounds = array<i64: 32, 256>}, {pipeline_mode = #tpu.pipeline_mode<synchronous>, transform_indices = @transform_2, window_bounds = array<i64: 1, 256>}, {pipeline_mode = #tpu.pipeline_mode<synchronous>, transform_indices = @transform_3, window_bounds = array<i64: 1, 256>}, {transform_indices = @transform_4, window_bounds = array<i64: 16, 256>}]} {
    %c0 = arith.constant 0 : index
    %c0_0 = arith.constant 0 : index
    %0 = vector.load %arg1[%c0, %c0_0] : memref<16x32xbf16, #tpu.memory_space<vmem>>, vector<16x32xbf16>
    %c0_1 = arith.constant 0 : index
    %c0_2 = arith.constant 0 : index
    %1 = vector.load %arg2[%c0_1, %c0_2] : memref<32x256xbf16, #tpu.memory_space<vmem>>, vector<32x256xbf16>
    %cst = arith.constant dense<0.000000e+00> : vector<16x256xf32>
    %2 = tpu.matmul %0, %1, %cst {dimension_numbers = #tpu.dot_dimension_numbers<[1], [0], [0], [1], [0, 0, 1, 1], [], []>} : vector<16x32xbf16>, vector<32x256xbf16>, vector<16x256xf32> -> vector<16x256xf32>
    %cst_3 = arith.constant dense<0xFF800000> : vector<16xf32>
    %3 = vector.multi_reduction <maximumf>, %2, %cst_3 [1] : vector<16x256xf32> to vector<16xf32>
    %4 = vector.shape_cast %3 : vector<16xf32> to vector<16x1xf32>
    %5 = vector.broadcast %4 : vector<16x1xf32> to vector<16x256xf32>
    %6 = arith.subf %2, %5 : vector<16x256xf32>
    %7 = math.exp %6 : vector<16x256xf32>
    %cst_4 = arith.constant dense<0.000000e+00> : vector<16xf32>
    %8 = vector.multi_reduction <add>, %7, %cst_4 [1] : vector<16x256xf32> to vector<16xf32>
    %9 = vector.shape_cast %8 : vector<16xf32> to vector<16x1xf32>
    %10 = tpu.reciprocal %9 {approx = true} : vector<16x1xf32> -> vector<16x1xf32>
    %11 = vector.broadcast %10 : vector<16x1xf32> to vector<16x256xf32>
    %12 = arith.mulf %7, %11 : vector<16x256xf32>
    %c0_5 = arith.constant 0 : index
    %c0_6 = arith.constant 0 : index
    %13 = vector.load %arg4[%c0_5, %c0_6] : memref<1x256xf32, #tpu.memory_space<vmem>>, vector<1x256xf32>
    %14 = vector.broadcast %13 : vector<1x256xf32> to vector<16x256xf32>
    %15 = arith.mulf %12, %14 : vector<16x256xf32>
    %c0_7 = arith.constant 0 : index
    %c0_8 = arith.constant 0 : index
    %16 = vector.load %arg5[%c0_7, %c0_8] : memref<16x256xf32, #tpu.memory_space<vmem>>, vector<16x256xf32>
    tpu.vector_store %arg5[%c0_7, %c0_8], %15 {strides = array<i32>} : memref<16x256xf32, #tpu.memory_space<vmem>>, vector<16x256xf32>,
    return
  }
  func.func @transform_0(%arg0: i32) -> (i32, i32) {
    %c0_i32 = arith.constant 0 : i32
    %c0_i32_0 = arith.constant 0 : i32
    return %arg0, %c0_i32 : i32, i32
  }
  func.func @transform_1(%arg0: i32) -> (i32, i32) {
    %c0_i32 = arith.constant 0 : i32
    %c0_i32_0 = arith.constant 0 : i32
    %c0_i32_1 = arith.constant 0 : i32
    return %c0_i32, %c0_i32_0 : i32, i32
  }
  func.func @transform_2(%arg0: i32) -> (i32, i32) {
    %c0_i32 = arith.constant 0 : i32
    %c0_i32_0 = arith.constant 0 : i32
    %c0_i32_1 = arith.constant 0 : i32
    return %c0_i32, %c0_i32_0 : i32, i32
  }
  func.func @transform_3(%arg0: i32) -> (i32, i32) {
    %c0_i32 = arith.constant 0 : i32
    %c0_i32_0 = arith.constant 0 : i32
    %c0_i32_1 = arith.constant 0 : i32
    return %c0_i32, %c0_i32_0 : i32, i32
  }
  func.func @transform_4(%arg0: i32) -> (i32, i32) {
    %c0_i32 = arith.constant 0 : i32
    %c0_i32_0 = arith.constant 0 : i32
    return %arg0, %c0_i32 : i32, i32
  }
}

</mosaic_0001>

<llo_original>
// kernel: demand_aware_rs_forward.1
$region0: #{demand_aware_rs_forward.1}
  #allocation0 [shape = 'u32[]', space=smem, size = 0x4, offset = 0x4, fixed_abs, tag = 'smem constant byte address 0x4 - core index']
  #allocation1 [shape = 'u32[144,128]{1,0:T(1,128)}', space=vmem, size = 0x12000, scoped, tag = 'internal scratch']
  %s0 = inlined_call_operand.vmem [shape: bf16[16,32], index: 0, kind: input, shape index: {}]
  %s1 = inlined_call_operand.vmem [shape: bf16[32,256], index: 1, kind: input, shape index: {}]
  %s2 = inlined_call_operand.vmem [shape: f32[1,256], index: 2, kind: input, shape index: {}]
  %s3 = inlined_call_operand.vmem [shape: f32[1,256], index: 3, kind: input, shape index: {}]
  %s4 = inlined_call_operand.vmem [shape: f32[16,256], index: 4, kind: output, shape index: {}]
  %s5 = sld [smem:[#allocation0]]
  $region26: #{demand_aware_rs_forward.1} parent=0
    _
  %s7 = ssub.s32 1, %s5
  %s8 = scalar_select 0, %s7, %s5
  // Predicated region
  $region2: #{demand_aware_rs_forward.1} parent=0 // pred_check
    _
  $region3: #{demand_aware_rs_forward.1} parent=0 // pred_check_branch
    %10 = sbr.rel (0) target = $region5
  $region4: #{demand_aware_rs_forward.1} parent=0 // pred_region
    _
  $region5: #{demand_aware_rs_forward.1} parent=0 // pred_fallthru
    _
  // Predicated region
  $region6: #{demand_aware_rs_forward.1} parent=0 // pred_check
    _
  $region7: #{demand_aware_rs_forward.1} parent=0 // pred_check_branch
    %12 = sbr.rel (0) target = $region9
  $region8: #{demand_aware_rs_forward.1} parent=0 // pred_region
    _
  $region9: #{demand_aware_rs_forward.1} parent=0 // pred_fallthru
    _
  // Predicated region
  $region10: #{demand_aware_rs_forward.1} parent=0 // pred_check
    _
  $region11: #{demand_aware_rs_forward.1} parent=0 // pred_check_branch
    %14 = sbr.rel (0) target = $region13
  $region12: #{demand_aware_rs_forward.1} parent=0 // pred_region
    _
  $region13: #{demand_aware_rs_forward.1} parent=0 // pred_fallthru
    _
  // Predicated region
  $region14: #{demand_aware_rs_forward.1} parent=0 // pred_check
    _
  $region15: #{demand_aware_rs_forward.1} parent=0 // pred_check_branch
    %16 = sbr.rel (0) target = $region17
  $region16: #{demand_aware_rs_forward.1} parent=0 // pred_region
    _
  $region17: #{demand_aware_rs_forward.1} parent=0 // pred_fallthru
    _
  %v18 = vld [vmem:[%s0] sm:$0xf]
  %v19 = vld [vmem:[%s0 + $0x4] sm:$0xf]
  %v20 = vld [vmem:[%s1] sm:$0xff]
  %v21 = vld [vmem:[%s1 + $0x8] sm:$0xff]
  %v22 = vld [vmem:[%s1 + $0x10] sm:$0xff]
  %v23 = vld [vmem:[%s1 + $0x18] sm:$0xff]
  %v26 = vunpack.c.l.b16 %v18
  %v27 = vunpack.c.l.b16 %v19
  %v28 = vpack.c.b16 %v27, %v26
  %v33 = vunpack.c.l.b16 %v20
  %v34 = vunpack.c.h.b16 %v20
  %v35 = vunpack.c.l.b16 %v21
  %v36 = vunpack.c.h.b16 %v21
  %v37 = vunpack.c.l.b16 %v22
  %v38 = vunpack.c.h.b16 %v22
  %v39 = vunpack.c.l.b16 %v23
  %v40 = vunpack.c.h.b16 %v23
  %v41 = vpack.c.b16 %v35, %v33
  %v42 = vpack.c.b16 %v36, %v34
  %v43 = vpack.c.b16 %v39, %v37
  %v44 = vpack.c.b16 %v40, %v38
  %vm49 = vcmask 261120
  %v51 = vsel %vm49, %v28, 0
  %53 = vmatprep.subr.bf16.mxu0 0
  %54 = vmatpush1.bf16.msra.mxu0 0
  %55 = vmatprep.subr.bf16.mxu0 0
  %56 = vmatpush1.bf16.msra.mxu0 0
  %57 = vmatprep.subr.bf16.mxu0 0
  %58 = vmatpush1.bf16.msra.mxu0 0
  %59 = vmatprep.subr.bf16.mxu0 0
  %60 = vmatpush1.bf16.msra.mxu0 0
  %61 = vmatprep.subr.bf16.mxu0 0
  %62 = vmatpush1.bf16.msra.mxu0 0
  %63 = vmatprep.subr.bf16.mxu0 0
  %64 = vmatpush1.bf16.msra.mxu0 0
  %65 = vmatprep.subr.bf16.mxu0 %v44
  %66 = vmatpush1.bf16.msra.mxu0 %v43
  %67 = vmatprep.subr.bf16.mxu0 %v42
  %68 = vmatpush1.bf16.msra.mxu0 %v41
  %69 = vmatprep.subr.bf16.mxu0 0
  %70 = vmatpush2.bf16.msra.mxu0 0
  %71 = vmatprep.subr.bf16.mxu0 0
  %72 = vmatpush2.bf16.msra.mxu0 0
  %73 = vmatprep.subr.bf16.mxu0 0
  %74 = vmatpush2.bf16.msra.mxu0 0
  %75 = vmatprep.subr.bf16.mxu0 0
  %76 = vmatpush2.bf16.msra.mxu0 0
  %77 = vmatprep.subr.bf16.mxu0 0
  %78 = vmatpush2.bf16.msra.mxu0 0
  %79 = vmatprep.subr.bf16.mxu0 0
  %80 = vmatpush2.bf16.msra.mxu0 0
  %81 = vmatprep.subr.bf16.mxu0 0
  %82 = vmatpush2.bf16.msra.mxu0 0
  %83 = vmatprep.subr.bf16.mxu0 0
  %84 = vmatpush2.bf16.msra.mxu0 0
  %85 = vmatprep.mubr.bf16.mxu0 0
  %86 = vmatmul.mubr.bf16.gmra.mxu0 %v51
  %v87 = vpop.f32.mrf.mxu0
  %v88 = vadd.f32 0.0, %v87
  %v89 = vpop.f32.mrf.mxu0
  %v90 = vadd.f32 0.0, %v89
  %v91 = vpop.f32.mrf.mxu0
  %v92 = vadd.f32 0.0, %v91
  %v93 = vpop.f32.mrf.mxu0
  %v94 = vadd.f32 0.0, %v93
  %95 = vdwg.mxu0
  %v96 = vmax.f32 %v88, %v90
  %97 = vmax.xlane.f32.xlu0 %v96
  %v98 = vpop.xlane.xlu0 %97
  %v99 = vmax.f32 %v92, %v94
  %100 = vmax.xlane.f32.xlu0 %v99
  %v101 = vpop.xlane.xlu0 %100
  %v102 = vsub.f32 %v88, %v98
  %v103 = vsub.f32 %v90, %v98
  %v104 = vsub.f32 %v92, %v101
  %v105 = vsub.f32 %v94, %v101
  %v106 = vmul.f32 %v102, 1.442695
  %v107 = vpow.pop %v106
  %v108 = vmul.f32 %v103, 1.442695
  %v109 = vpow.pop %v108
  %v110 = vmul.f32 %v104, 1.442695
  %v111 = vpow.pop %v110
  %v112 = vmul.f32 %v105, 1.442695
  %v113 = vpow.pop %v112
  %v114 = vadd.f32 %v107, %v109
  %115 = vadd.xlane.f32.xlu0 %v114
  %v116 = vpop.xlane.xlu0 %115
  %v117 = vadd.f32 %v111, %v113
  %118 = vadd.xlane.f32.xlu0 %v117
  %v119 = vpop.xlane.xlu0 %118
  %v120 = vrcp.pop %v116
  %v121 = vrcp.pop %v119
  %v122 = vmul.f32 %v107, %v120
  %v123 = vmul.f32 %v109, %v120
  %v124 = vmul.f32 %v111, %v121
  %v125 = vmul.f32 %v113, %v121
  %v126 = vld [vmem:[%s3] sm:$0x3]
  %v128 = vlaneseq
  %v129 = vshrl.u32 %v128, 7
  %v130 = vsub.s32 0, %v129
  %v131 = vrot.slane %v126, %v130
  %v132 = vlaneseq
  %v133 = vshrl.u32 %v132, 7
  %v134 = vsub.s32 1, %v133
  %v135 = vrot.slane %v126, %v134
  %v138 = vmul.f32 %v122, %v131
  %v139 = vmul.f32 %v123, %v135
  %v140 = vmul.f32 %v124, %v131
  %v141 = vmul.f32 %v125, %v135
  %142 = vst [vmem:[%s4] sm:$0xff] %v138
  %143 = vst [vmem:[%s4 + $0x8] sm:$0xff] %v139
  %144 = vst [vmem:[%s4 + $0x10] sm:$0xff] %v140
  %145 = vst [vmem:[%s4 + $0x18] sm:$0xff] %v141
  // Predicated region
  $region18: #{demand_aware_rs_forward.1} parent=0 // pred_check
    _
  $region19: #{demand_aware_rs_forward.1} parent=0 // pred_check_branch
    %147 = sbr.rel (0) target = $region21
  $region20: #{demand_aware_rs_forward.1} parent=0 // pred_region
    _
  $region21: #{demand_aware_rs_forward.1} parent=0 // pred_fallthru
    _
  // Predicated region
  $region22: #{demand_aware_rs_forward.1} parent=0 // pred_check
    _
  $region23: #{demand_aware_rs_forward.1} parent=0 // pred_check_branch
    %149 = sbr.rel (0) target = $region25
  $region24: #{demand_aware_rs_forward.1} parent=0 // pred_region
    _
  $region25: #{demand_aware_rs_forward.1} parent=0 // pred_fallthru
    _

</llo_original>
